<compile_context>
chip_gen: v7x
topology: tpu7x:2x2x1
jax: 0.10.0
libtpu: 0.0.40
codegen_flags: <defaults>
</compile_context>

<pallas_src>
import jax
import jax.numpy as jnp
from jax.experimental import pallas as pl
from jax.experimental.pallas import tpu as pltpu


def _filt_linear_kernel(xr_ref, xi_ref, wr_ref, wi_ref, b_ref, o_ref):
    # wr_ref / wi_ref: (1, F) row vectors, VMEM-resident across grid steps.
    wr = wr_ref[...].astype(jnp.float32)
    wi = wi_ref[...].astype(jnp.float32)
    xr = xr_ref[...].astype(jnp.float32)      # (TM, F)
    xi = xi_ref[...].astype(jnp.float32)
    # VPU multiply + lane (XLU) reduce with f32 accumulation.  Hidden under
    # the input DMA; the MXU is deliberately not used (N=1 matvec is wasteful).
    yr = jnp.sum(xr * wr, axis=-1, keepdims=True)   # (TM, 1) f32
    yi = jnp.sum(xi * wi, axis=-1, keepdims=True)   # (TM, 1) f32
    y = jnp.concatenate([yr, yi], axis=-1)          # (TM, 2): real col 0, imag col 1
    y = y + b_ref[...].astype(jnp.float32)          # fused bias epilogue (free)
    o_ref[...] = y.astype(o_ref.dtype)


def _round_up(x, m):
    return ((x + m - 1) // m) * m


def _vmem_capacity_bytes():
    """Per-TensorCore VMEM capacity; conservative fallback if the query fails."""
    try:
        info = pltpu.get_tpu_info()
        cap = getattr(info, "vmem_capacity_bytes", None)
        if cap:
            return int(cap)
    except Exception:
        pass
    return 64 * 1024 * 1024      # v7x per-TC VMEM: safe lower bound everywhere


def _pick_tile_m(m, f, itemsize, vmem_capacity):
    """Rows per grid step, sized from the per-generation VMEM budget.

    Lane-padding aware: a (TM, F) block occupies TM * roundup(F, 128) bytes-
    per-element of VMEM and the (TM, 2) output block pads to 128 lanes; all
    blocks are double-buffered by the BlockSpec pipeline.
    """
    f_pad = _round_up(max(f, 1), 128)
    # 2 input arrays x 2 buffers + 1 output x 2 buffers (lane padded), per row.
    bytes_per_row = (2 * 2 * f_pad + 2 * 128) * itemsize
    # ~37.5% of physical VMEM for pipelined blocks, capped at 48 MiB:
    #   128 MiB chips (v5e/v6e) -> 48 MiB, 64 MiB chips (v7x) -> 24 MiB.
    budget = min(int(vmem_capacity * 0.375), 48 * 1024 * 1024)
    tm = max(8, (budget // bytes_per_row) // 8 * 8)
    if m >= 1024:
        # Keep >= 2 grid steps so dimension_semantics=("parallel",) actually
        # shards work across v7x's two TensorCores.
        tm = min(tm, _round_up(pl.cdiv(m, 2), 8))
    if tm > m:
        tm = m          # single full block (equal-to-dim blocks are legal)
    return tm


def filt_linear(x_real, x_imag, w_real, w_imag, b_real=None, b_imag=None,
                *, tile_m=None):
    """x_real/x_imag: (B, S, F); w_real/w_imag: (1, F) (PyTorch Linear layout).

    Optional b_real/b_imag: (1,)-shaped biases (module default is bias=False).
    Returns (y_real, y_imag), each (B, S, 1).
    """
    B, S, F = x_real.shape
    M = B * S
    dtype = x_real.dtype
    itemsize = jnp.dtype(dtype).itemsize

    xr = x_real.reshape(M, F)       # contiguous: no HBM copy
    xi = x_imag.reshape(M, F)
    wr = w_real.reshape(1, F)
    wi = w_imag.reshape(1, F)

    br = jnp.float32(0.0) if b_real is None else b_real.reshape(()).astype(jnp.float32)
    bi = jnp.float32(0.0) if b_imag is None else b_imag.reshape(()).astype(jnp.float32)
    bias = jnp.stack([br, bi]).reshape(1, 2)

    vmem_cap = _vmem_capacity_bytes()
    if tile_m is not None:
        TM = max(8, (int(tile_m) // 8) * 8)
    else:
        TM = _pick_tile_m(M, F, itemsize, vmem_cap)
    if TM > M:
        TM = M

    grid = (pl.cdiv(M, TM),)        # ragged last block: OOB writes are masked
    vmem_limit = min(int(vmem_cap * 0.75), 96 * 1024 * 1024)

    cost = pl.CostEstimate(
        flops=4 * M * F,
        transcendentals=0,
        bytes_accessed=(2 * M * F + 2 * F + 2 * M) * itemsize + 8,
    )

    out = pl.pallas_call(
        _filt_linear_kernel,
        out_shape=jax.ShapeDtypeStruct((M, 2), dtype),
        grid_spec=pltpu.PrefetchScalarGridSpec(
            num_scalar_prefetch=0,
            grid=grid,
            in_specs=[
                pl.BlockSpec((TM, F), lambda i: (i, 0)),
                pl.BlockSpec((TM, F), lambda i: (i, 0)),
                pl.BlockSpec((1, F), lambda i: (0, 0)),   # VMEM-resident weights
                pl.BlockSpec((1, F), lambda i: (0, 0)),
                pl.BlockSpec((1, 2), lambda i: (0, 0)),   # fused bias (8 bytes)
            ],
            out_specs=pl.BlockSpec((TM, 2), lambda i: (i, 0)),
        ),
        compiler_params=pltpu.CompilerParams(
            dimension_semantics=("parallel",),            # independent M tiles
            vmem_limit_bytes=vmem_limit,
        ),
        cost_estimate=cost,
    )(xr, xi, wr, wi, bias)

    out = out.reshape(B, S, 2)
    return out[..., 0:1], out[..., 1:2]


if __name__ == "__main__":
    def ref(x, w, b=None):
        # Pure elementwise + reduce reference (avoids TPU matmul default
        # precision issues); exact f32 comparison target.
        y = jnp.sum(x * w.reshape(1, 1, -1), axis=-1, keepdims=True)
        if b is not None:
            y = y + b.reshape(1, 1, 1)
        return y

    # --- Test 1: small single-block case (module defaults: bias=False) -----
    B, S, F = 2, 8, 32
    k1, k2, k3, k4 = jax.random.split(jax.random.PRNGKey(0), 4)
    x_real = jax.random.normal(k1, (B, S, F), jnp.float32)
    x_imag = jax.random.normal(k2, (B, S, F), jnp.float32)
    # nn.Linear default init: U(-1/sqrt(F), 1/sqrt(F)), weight shape (1, F).
    bound = 1.0 / jnp.sqrt(jnp.float32(F))
    w_real = jax.random.uniform(k3, (1, F), jnp.float32, -bound, bound)
    w_imag = jax.random.uniform(k4, (1, F), jnp.float32, -bound, bound)

    y_real, y_imag = filt_linear(x_real, x_imag, w_real, w_imag)
    jax.block_until_ready((y_real, y_imag))
    assert y_real.shape == (B, S, 1) and y_imag.shape == (B, S, 1)
    assert jnp.allclose(y_real, ref(x_real, w_real), atol=1e-5, rtol=1e-5)
    assert jnp.allclose(y_imag, ref(x_imag, w_imag), atol=1e-5, rtol=1e-5)

    # --- Test 2: multi-step grid with a ragged last block (M % TM != 0) and
    #     F spanning multiple 128-lane vregs. ------------------------------
    B2, S2, F2 = 3, 67, 384          # M = 201; tile_m=64 -> blocks 64,64,64,9
    k1, k2, k3, k4 = jax.random.split(jax.random.PRNGKey(1), 4)
    xr2 = jax.random.normal(k1, (B2, S2, F2), jnp.float32)
    xi2 = jax.random.normal(k2, (B2, S2, F2), jnp.float32)
    bound2 = 1.0 / jnp.sqrt(jnp.float32(F2))
    wr2 = jax.random.uniform(k3, (1, F2), jnp.float32, -bound2, bound2)
    wi2 = jax.random.uniform(k4, (1, F2), jnp.float32, -bound2, bound2)
    yr2, yi2 = filt_linear(xr2, xi2, wr2, wi2, tile_m=64)
    jax.block_until_ready((yr2, yi2))
    assert jnp.allclose(yr2, ref(xr2, wr2), atol=1e-5, rtol=1e-5)
    assert jnp.allclose(yi2, ref(xi2, wi2), atol=1e-5, rtol=1e-5)

    # --- Test 3: fused-bias epilogue (bias=True construction). -------------
    k5, k6 = jax.random.split(jax.random.PRNGKey(2), 2)
    b_real = jax.random.uniform(k5, (1,), jnp.float32, -bound, bound)
    b_imag = jax.random.uniform(k6, (1,), jnp.float32, -bound, bound)
    yb_real, yb_imag = filt_linear(x_real, x_imag, w_real, w_imag, b_real, b_imag)
    jax.block_until_ready((yb_real, yb_imag))
    assert jnp.allclose(yb_real, ref(x_real, w_real, b_real), atol=1e-5, rtol=1e-5)
    assert jnp.allclose(yb_imag, ref(x_imag, w_imag, b_imag), atol=1e-5, rtol=1e-5)

    print("KERNEL_OK")
</pallas_src>

<mosaic_0001>
module attributes {stable_mosaic.version = 11 : i64} {
  func.func @_filt_linear_kernel(%arg0: i32, %arg1: memref<16x32xf32, #tpu.memory_space<vmem>>, %arg2: memref<16x32xf32, #tpu.memory_space<vmem>>, %arg3: memref<1x32xf32, #tpu.memory_space<vmem>>, %arg4: memref<1x32xf32, #tpu.memory_space<vmem>>, %arg5: memref<1x2xf32, #tpu.memory_space<vmem>>, %arg6: memref<16x2xf32, #tpu.memory_space<vmem>>) attributes {dimension_semantics = [#tpu.dimension_semantics<parallel>], iteration_bounds = array<i64: 1>, scalar_prefetch = 0 : i64, scratch_operands = 0 : i64, tpu.core_type = #tpu.core_type<tc>, window_params = [{transform_indices = @transform_0, window_bounds = array<i64: 16, 32>}, {transform_indices = @transform_1, window_bounds = array<i64: 16, 32>}, {pipeline_mode = #tpu.pipeline_mode<synchronous>, transform_indices = @transform_2, window_bounds = array<i64: 1, 32>}, {pipeline_mode = #tpu.pipeline_mode<synchronous>, transform_indices = @transform_3, window_bounds = array<i64: 1, 32>}, {pipeline_mode = #tpu.pipeline_mode<synchronous>, transform_indices = @transform_4, window_bounds = array<i64: 1, 2>}, {transform_indices = @transform_5, window_bounds = array<i64: 16, 2>}]} {
    %c0 = arith.constant 0 : index
    %c0_0 = arith.constant 0 : index
    %0 = vector.load %arg3[%c0, %c0_0] : memref<1x32xf32, #tpu.memory_space<vmem>>, vector<1x32xf32>
    %c0_1 = arith.constant 0 : index
    %c0_2 = arith.constant 0 : index
    %1 = vector.load %arg4[%c0_1, %c0_2] : memref<1x32xf32, #tpu.memory_space<vmem>>, vector<1x32xf32>
    %c0_3 = arith.constant 0 : index
    %c0_4 = arith.constant 0 : index
    %2 = vector.load %arg1[%c0_3, %c0_4] : memref<16x32xf32, #tpu.memory_space<vmem>>, vector<16x32xf32>
    %c0_5 = arith.constant 0 : index
    %c0_6 = arith.constant 0 : index
    %3 = vector.load %arg2[%c0_5, %c0_6] : memref<16x32xf32, #tpu.memory_space<vmem>>, vector<16x32xf32>
    %4 = vector.broadcast %0 : vector<1x32xf32> to vector<16x32xf32>
    %5 = arith.mulf %2, %4 : vector<16x32xf32>
    %cst = arith.constant dense<0.000000e+00> : vector<16xf32>
    %6 = vector.multi_reduction <add>, %5, %cst [1] : vector<16x32xf32> to vector<16xf32>
    %7 = vector.shape_cast %6 : vector<16xf32> to vector<16x1xf32>
    %8 = vector.broadcast %1 : vector<1x32xf32> to vector<16x32xf32>
    %9 = arith.mulf %3, %8 : vector<16x32xf32>
    %cst_7 = arith.constant dense<0.000000e+00> : vector<16xf32>
    %10 = vector.multi_reduction <add>, %9, %cst_7 [1] : vector<16x32xf32> to vector<16xf32>
    %11 = vector.shape_cast %10 : vector<16xf32> to vector<16x1xf32>
    %12 = tpu.concatenate %7, %11 in 1 : vector<16x1xf32>, vector<16x1xf32> -> vector<16x2xf32>
    %c0_8 = arith.constant 0 : index
    %c0_9 = arith.constant 0 : index
    %13 = vector.load %arg5[%c0_8, %c0_9] : memref<1x2xf32, #tpu.memory_space<vmem>>, vector<1x2xf32>
    %14 = vector.broadcast %13 : vector<1x2xf32> to vector<16x2xf32>
    %15 = arith.addf %12, %14 : vector<16x2xf32>
    %c0_10 = arith.constant 0 : index
    %c0_11 = arith.constant 0 : index
    %16 = vector.load %arg6[%c0_10, %c0_11] : memref<16x2xf32, #tpu.memory_space<vmem>>, vector<16x2xf32>
    tpu.vector_store %arg6[%c0_10, %c0_11], %15 {strides = array<i32>} : memref<16x2xf32, #tpu.memory_space<vmem>>, vector<16x2xf32>,
    return
  }
  func.func @transform_0(%arg0: i32) -> (i32, i32) {
    %c0_i32 = arith.constant 0 : i32
    %c0_i32_0 = arith.constant 0 : i32
    return %arg0, %c0_i32 : i32, i32
  }
  func.func @transform_1(%arg0: i32) -> (i32, i32) {
    %c0_i32 = arith.constant 0 : i32
    %c0_i32_0 = arith.constant 0 : i32
    return %arg0, %c0_i32 : i32, i32
  }
  func.func @transform_2(%arg0: i32) -> (i32, i32) {
    %c0_i32 = arith.constant 0 : i32
    %c0_i32_0 = arith.constant 0 : i32
    %c0_i32_1 = arith.constant 0 : i32
    return %c0_i32, %c0_i32_0 : i32, i32
  }
  func.func @transform_3(%arg0: i32) -> (i32, i32) {
    %c0_i32 = arith.constant 0 : i32
    %c0_i32_0 = arith.constant 0 : i32
    %c0_i32_1 = arith.constant 0 : i32
    return %c0_i32, %c0_i32_0 : i32, i32
  }
  func.func @transform_4(%arg0: i32) -> (i32, i32) {
    %c0_i32 = arith.constant 0 : i32
    %c0_i32_0 = arith.constant 0 : i32
    %c0_i32_1 = arith.constant 0 : i32
    return %c0_i32, %c0_i32_0 : i32, i32
  }
  func.func @transform_5(%arg0: i32) -> (i32, i32) {
    %c0_i32 = arith.constant 0 : i32
    %c0_i32_0 = arith.constant 0 : i32
    return %arg0, %c0_i32 : i32, i32
  }
}

</mosaic_0001>

<llo_original>
// kernel: tpu_custom_call.1
$region0: #{tpu_custom_call.1}
  #allocation0 [shape = 'u32[]', space=smem, size = 0x4, offset = 0x4, fixed_abs, tag = 'smem constant byte address 0x4 - core index']
  #allocation1 [shape = 'u32[144,128]{1,0:T(1,128)}', space=vmem, size = 0x12000, scoped, tag = 'internal scratch']
  %s0 = inlined_call_operand.hbm [shape: f32[16,32], index: 0, kind: input, shape index: {}]
  %s1 = inlined_call_operand.hbm [shape: f32[16,32], index: 1, kind: input, shape index: {}]
  %s2 = inlined_call_operand.vmem [shape: f32[1,32], index: 2, kind: input, shape index: {}]
  %s3 = inlined_call_operand.vmem [shape: f32[1,32], index: 3, kind: input, shape index: {}]
  %s4 = inlined_call_operand.vmem [shape: f32[1,2], index: 4, kind: input, shape index: {}]
  %s5 = inlined_call_operand.vmem [shape: f32[16,2], index: 5, kind: output, shape index: {}]
  %s6 = sld [smem:[#allocation0]]
  $region38: #{tpu_custom_call.1} parent=0
    _
  %s8 = ssub.s32 1, %s6
  %s9 = scalar_select 0, %s8, %s6
  $region1: #{tpu_custom_call.1} parent=0
    #allocation2 [shape = 'u8[8192]{0}', space=vmem, size = 0x2000, scoped, tag = 'input window, operand 0, single buffered']
    #allocation3 [shape = 's32[1]{0}', space=sflag, size = 0x4, scoped, tag = 'scoped memory for tpu_custom_call.1']
    #allocation4 [shape = 'u8[8192]{0}', space=vmem, size = 0x2000, scoped, tag = 'input window, operand 1, single buffered']
    #allocation5 [shape = 's32[1]{0}', space=sflag, size = 0x4, scoped, tag = 'scoped memory for tpu_custom_call.1']
    %10 = vsyncpa [#allocation3], 0
    %11 = vsyncpa [#allocation5], 0
    // Predicated region
    $region2: #{tpu_custom_call.1} parent=1 // pred_check
      _
    $region3: #{tpu_custom_call.1} parent=1 // pred_check_branch
      %13 = sbr.rel (0) target = $region5
    $region4: #{tpu_custom_call.1} parent=1 // pred_region
      %s15 = ssub.s32 256, 256
      %16 = vsyncadd [#allocation3], %s15
      %s17 = sshll.u32 [#allocation2], 4
      %s18 = int_to_ptr.vmem [resolvable:$true] %s17
      %23 = dma.hbm_to_vmem [thread:$0]  %s0, 256, %s18, [#allocation3], 128, 128, 8
    $region5: #{tpu_custom_call.1} parent=1 // pred_fallthru
      _
    // Predicated region
    $region6: #{tpu_custom_call.1} parent=1 // pred_check
      _
    $region7: #{tpu_custom_call.1} parent=1 // pred_check_branch
      %25 = sbr.rel (0) target = $region9
    $region8: #{tpu_custom_call.1} parent=1 // pred_region
      %s27 = ssub.s32 256, 256
      %28 = vsyncadd [#allocation5], %s27
      %s29 = sshll.u32 [#allocation4], 4
      %s30 = int_to_ptr.vmem [resolvable:$true] %s29
      %35 = dma.hbm_to_vmem [thread:$0]  %s1, 256, %s30, [#allocation5], 128, 128, 8
    $region9: #{tpu_custom_call.1} parent=1 // pred_fallthru
      _
    // Predicated region
    $region10: #{tpu_custom_call.1} parent=1 // pred_check
      _
    $region11: #{tpu_custom_call.1} parent=1 // pred_check_branch
      %37 = sbr.rel (0) target = $region13
    $region12: #{tpu_custom_call.1} parent=1 // pred_region
      _
    $region13: #{tpu_custom_call.1} parent=1 // pred_fallthru
      _
    // Predicated region
    $region14: #{tpu_custom_call.1} parent=1 // pred_check
      _
    $region15: #{tpu_custom_call.1} parent=1 // pred_check_branch
      %39 = sbr.rel (0) target = $region17
    $region16: #{tpu_custom_call.1} parent=1 // pred_region
      _
    $region17: #{tpu_custom_call.1} parent=1 // pred_fallthru
      _
    // Predicated region
    $region18: #{tpu_custom_call.1} parent=1 // pred_check
      _
    $region19: #{tpu_custom_call.1} parent=1 // pred_check_branch
      %41 = sbr.rel (0) target = $region21
    $region20: #{tpu_custom_call.1} parent=1 // pred_region
      _
    $region21: #{tpu_custom_call.1} parent=1 // pred_fallthru
      _
    // Predicated region
    $region22: #{tpu_custom_call.1} parent=1 // pred_check
      _
    $region23: #{tpu_custom_call.1} parent=1 // pred_check_branch
      %43 = sbr.rel (0) target = $region25
    $region24: #{tpu_custom_call.1} parent=1 // pred_region
      %44 = dma.done [#allocation3], 256
    $region25: #{tpu_custom_call.1} parent=1 // pred_fallthru
      _
    // Predicated region
    $region26: #{tpu_custom_call.1} parent=1 // pred_check
      _
    $region27: #{tpu_custom_call.1} parent=1 // pred_check_branch
      %46 = sbr.rel (0) target = $region29
    $region28: #{tpu_custom_call.1} parent=1 // pred_region
      %47 = dma.done [#allocation5], 256
    $region29: #{tpu_custom_call.1} parent=1 // pred_fallthru
      _
    %v48 = vld [vmem:[%s2] sm:$0x1]
    %v49 = vld [vmem:[%s3] sm:$0x1]
    %v50 = vld [vmem:[#allocation2] sm:$0xff]
    %v51 = vld [vmem:[#allocation2 + $0x8] sm:$0xff]
    %v52 = vld [vmem:[#allocation4] sm:$0xff]
    %v53 = vld [vmem:[#allocation4 + $0x8] sm:$0xff]
    %v55 = vlaneseq
    %v56 = vshrl.u32 %v55, 7
    %v57 = vsub.s32 0, %v56
    %v58 = vrot.slane %v48, %v57
    %v60 = vmul.f32 %v50, %v58
    %v61 = vmul.f32 %v51, %v58
    %vm62 = vcmask 261120
    %v63 = vsel %vm62, %v60, 0.0
    %64 = vadd.xlane.f32.xlu0 %v63
    %v65 = vpop.xlane.xlu0 %64
    %v66 = vsel %vm62, %v61, 0.0
    %67 = vadd.xlane.f32.xlu0 %v66
    %v68 = vpop.xlane.xlu0 %67
    %v70 = vlaneseq
    %v71 = vshrl.u32 %v70, 7
    %v72 = vsub.s32 0, %v71
    %v73 = vrot.slane %v49, %v72
    %v75 = vmul.f32 %v52, %v73
    %v76 = vmul.f32 %v53, %v73
    %v77 = vsel %vm62, %v75, 0.0
    %78 = vadd.xlane.f32.xlu0 %v77
    %v79 = vpop.xlane.xlu0 %78
    %v80 = vsel %vm62, %v76, 0.0
    %81 = vadd.xlane.f32.xlu0 %v80
    %v82 = vpop.xlane.xlu0 %81
    %vm83 = vcmask 7168
    %v84 = vsel %vm83, %v65, %v79
    %v85 = vsel %vm83, %v68, %v82
    %v86 = vld [vmem:[%s4] sm:$0x1]
    %v88 = vlaneseq
    %v89 = vshrl.u32 %v88, 7
    %v90 = vsub.s32 0, %v89
    %v91 = vrot.slane %v86, %v90
    %v93 = vadd.f32 %v84, %v91
    %v94 = vadd.f32 %v85, %v91
    %vm95 = vcmask 15360
    %96 = vst.msk [vmem:[%s5] sm:$0xff] %vm95, %v93
    %97 = vst.msk [vmem:[%s5 + $0x8] sm:$0xff] %vm95, %v94
    // Predicated region
    $region30: #{tpu_custom_call.1} parent=1 // pred_check
      _
    $region31: #{tpu_custom_call.1} parent=1 // pred_check_branch
      %99 = sbr.rel (0) target = $region33
    $region32: #{tpu_custom_call.1} parent=1 // pred_region
      _
    $region33: #{tpu_custom_call.1} parent=1 // pred_fallthru
      _
    // Predicated region
    $region34: #{tpu_custom_call.1} parent=1 // pred_check
      _
    $region35: #{tpu_custom_call.1} parent=1 // pred_check_branch
      %101 = sbr.rel (0) target = $region37
    $region36: #{tpu_custom_call.1} parent=1 // pred_region
      _
    $region37: #{tpu_custom_call.1} parent=1 // pred_fallthru
      _
    %102 = vsyncpa [#allocation3], 1
    %103 = vsyncpa [#allocation5], 1

</llo_original>
